<compile_context>
chip_gen: v7x
topology: tpu7x:2x2x1
jax: 0.10.0
libtpu: 0.0.40
codegen_flags: <defaults>
</compile_context>

<pallas_src>
import jax
import jax.numpy as jnp
from jax.experimental import pallas as pl
from jax.experimental.pallas import tpu as pltpu

_LANE = 128
_SUBLANE = 8


def _round_up(n, m):
    return ((n + m - 1) // m) * m


def _flexible_classifier_kernel(
    slab_ref,   # (BM, Fp)  bf16  packed [x | emb | zero-pad]
    w1_ref,     # (Fp, H1)  bf16  (zero rows for emb/pad part)
    b1_ref,     # (1, H1)   f32
    w2_ref,     # (H1, H2)  bf16
    b2_ref,     # (1, H2)   f32
    wch_ref,    # (H2, Cp)  bf16  combine weight, hidden part (zero-padded cols)
    wce_ref,    # (Fp, Cp)  bf16  combine weight, emb part (zero rows elsewhere)
    bc_ref,     # (1, Cp)   f32
    out_ref,    # (BM, Cp)  f32
):
    s = slab_ref[...]

    # Layer 1: Linear + ReLU (Dropout is identity at inference).
    h1 = jnp.dot(s, w1_ref[...], preferred_element_type=jnp.float32) + b1_ref[...]
    h1 = jnp.maximum(h1, 0.0).astype(w2_ref.dtype)

    # Layer 2: Linear + ReLU.
    h2 = jnp.dot(h1, w2_ref[...], preferred_element_type=jnp.float32) + b2_ref[...]
    h2 = jnp.maximum(h2, 0.0).astype(wch_ref.dtype)

    # combine_and_classify on concat([h2, emb], axis=1):
    #   concat([h2, emb]) @ Wc == h2 @ Wc_h + emb @ Wc_e
    # (emb @ Wc_e is computed as slab @ Wc_e_padded; non-emb rows are zero.)
    out = (
        jnp.dot(h2, wch_ref[...], preferred_element_type=jnp.float32)
        + jnp.dot(s, wce_ref[...], preferred_element_type=jnp.float32)
        + bc_ref[...]
    )
    out_ref[...] = out.astype(out_ref.dtype)


def flexible_classifier_forward(x, embeddings, params, *, block_m=512):
    """Fused forward pass. x: (B, 70), embeddings: (B, input_size)."""
    B, F_x = x.shape
    E = embeddings.shape[1]
    H1 = params["w1"].shape[1]
    H2 = params["w2"].shape[1]
    C = params["bc"].shape[-1]

    f_tot = F_x + E
    Fp = _round_up(f_tot, _LANE)          # lane-aligned packed input width
    Cp = _round_up(C, _LANE)              # lane-dense output width

    # Batch tile: big enough to pipeline, small enough for v7x's 64 MiB VMEM.
    BM = min(block_m, _round_up(B, _SUBLANE))
    Bp = _round_up(B, BM)
    grid = (Bp // BM,)

    bf16 = jnp.bfloat16

    # Pack [x | emb] into one lane-aligned bf16 slab (padded rows are zero).
    slab = jnp.zeros((Bp, Fp), bf16)
    slab = slab.at[:B, :F_x].set(x.astype(bf16))
    slab = slab.at[:B, F_x:f_tot].set(embeddings.astype(bf16))

    # Zero-pad weights so the kernel never has to slice the packed slab.
    w1s = jnp.zeros((Fp, H1), bf16).at[:F_x, :].set(params["w1"].astype(bf16))
    w2b = params["w2"].astype(bf16)
    wch = jnp.zeros((H2, Cp), bf16).at[:, :C].set(params["wc_h"].astype(bf16))
    wce = jnp.zeros((Fp, Cp), bf16).at[F_x:f_tot, :C].set(params["wc_e"].astype(bf16))

    b1 = params["b1"].astype(jnp.float32)
    b2 = params["b2"].astype(jnp.float32)
    bc = jnp.zeros((1, Cp), jnp.float32).at[:, :C].set(params["bc"].astype(jnp.float32))

    weight_bytes = 2 * (w1s.size + w2b.size + wch.size + wce.size) + 4 * (
        b1.size + b2.size + bc.size
    )
    cost = pl.CostEstimate(
        flops=2 * Bp * (Fp * H1 + H1 * H2 + H2 * Cp + Fp * Cp),
        transcendentals=0,
        bytes_accessed=Bp * Fp * 2 + Bp * Cp * 4 + weight_bytes,
    )

    out_pad = pl.pallas_call(
        _flexible_classifier_kernel,
        out_shape=jax.ShapeDtypeStruct((Bp, Cp), jnp.float32),
        grid=grid,
        in_specs=[
            pl.BlockSpec((BM, Fp), lambda i: (i, 0)),    # activations: tiled
            pl.BlockSpec((Fp, H1), lambda i: (0, 0)),    # weights: resident
            pl.BlockSpec((1, H1), lambda i: (0, 0)),
            pl.BlockSpec((H1, H2), lambda i: (0, 0)),
            pl.BlockSpec((1, H2), lambda i: (0, 0)),
            pl.BlockSpec((H2, Cp), lambda i: (0, 0)),
            pl.BlockSpec((Fp, Cp), lambda i: (0, 0)),
            pl.BlockSpec((1, Cp), lambda i: (0, 0)),
        ],
        out_specs=pl.BlockSpec((BM, Cp), lambda i: (i, 0)),
        compiler_params=pltpu.CompilerParams(
            dimension_semantics=("parallel",),
        ),
        cost_estimate=cost,
    )(slab, w1s, b1, w2b, b2, wch, wce, bc)

    # Strip batch padding and lane padding outside the kernel.
    return out_pad[:B, :C]


def init_params(key, input_size, num_classes, hidden_layers):
    """Deterministic init matching PyTorch Linear shapes.

    PyTorch stores Linear weight as (out, in); we store transposed (in, out).
    Uses PyTorch-style U(-1/sqrt(fan_in), 1/sqrt(fan_in)).
    """
    h1, h2 = hidden_layers
    mlp_in = 14 * 5  # hard-coded in the reference module
    ks = jax.random.split(key, 6)

    def uni(k, shape, fan_in):
        bound = 1.0 / jnp.sqrt(fan_in)
        return jax.random.uniform(k, shape, jnp.float32, -bound, bound)

    return {
        "w1": uni(ks[0], (mlp_in, h1), mlp_in),
        "b1": uni(ks[1], (1, h1), mlp_in),
        "w2": uni(ks[2], (h1, h2), h1),
        "b2": uni(ks[3], (1, h2), h1),
        # combine_and_classify: Linear(h2 + input_size -> num_classes),
        # split along the input axis into hidden / embeddings parts.
        "wc_h": uni(ks[4], (h2, num_classes), h2 + input_size),
        "wc_e": uni(ks[5], (input_size, num_classes), h2 + input_size),
        "bc": uni(jax.random.fold_in(key, 99), (1, num_classes), h2 + input_size),
    }


def reference_forward(x, embeddings, params):
    """Pure-JAX reference of the PyTorch forward (eval mode), mirroring the
    kernel's bf16 operand rounding (accumulation stays f32)."""
    bf = lambda a: a.astype(jnp.bfloat16).astype(jnp.float32)
    xb, eb = bf(x), bf(embeddings)
    w1, w2 = bf(params["w1"]), bf(params["w2"])
    wch, wce = bf(params["wc_h"]), bf(params["wc_e"])

    h1 = jnp.maximum(xb @ w1 + params["b1"], 0.0)
    h1 = bf(h1)
    h2 = jnp.maximum(h1 @ w2 + params["b2"], 0.0)
    h2 = bf(h2)
    return h2 @ wch + eb @ wce + params["bc"]


if __name__ == "__main__":
    # Small shapes consistent with the module:
    #   mlp input features = 14 * 5 = 70, embeddings dim = input_size.
    B = 2
    input_size = 16          # embeddings dimension
    num_classes = 5
    hidden_layers = (64, 32)
    # TODO(synk): nn.Dropout in training mode (random masking) is not modeled;
    # the kernel implements the eval-mode forward (dropout = identity).

    key = jax.random.PRNGKey(0)
    kx, ke, kp = jax.random.split(key, 3)
    x = jax.random.normal(kx, (B, 14 * 5), jnp.float32)
    embeddings = jax.random.normal(ke, (B, input_size), jnp.float32)
    params = init_params(kp, input_size, num_classes, hidden_layers)

    out = flexible_classifier_forward(x, embeddings, params)
    out = jax.block_until_ready(out)

    ref = reference_forward(x, embeddings, params)
    assert out.shape == (B, num_classes)
    assert jnp.allclose(out, ref, atol=1e-2, rtol=1e-2), "mismatch vs reference"
    print("KERNEL_OK")
</pallas_src>

<mosaic_0001>
module attributes {stable_mosaic.version = 11 : i64} {
  func.func @_flexible_classifier_kernel(%arg0: i32, %arg1: memref<8x128xbf16, #tpu.memory_space<vmem>>, %arg2: memref<128x64xbf16, #tpu.memory_space<vmem>>, %arg3: memref<1x64xf32, #tpu.memory_space<vmem>>, %arg4: memref<64x32xbf16, #tpu.memory_space<vmem>>, %arg5: memref<1x32xf32, #tpu.memory_space<vmem>>, %arg6: memref<32x128xbf16, #tpu.memory_space<vmem>>, %arg7: memref<128x128xbf16, #tpu.memory_space<vmem>>, %arg8: memref<1x128xf32, #tpu.memory_space<vmem>>, %arg9: memref<8x128xf32, #tpu.memory_space<vmem>>) attributes {dimension_semantics = [#tpu.dimension_semantics<parallel>], iteration_bounds = array<i64: 1>, scalar_prefetch = 0 : i64, scratch_operands = 0 : i64, tpu.core_type = #tpu.core_type<tc>, window_params = [{transform_indices = @transform_0, window_bounds = array<i64: 8, 128>}, {pipeline_mode = #tpu.pipeline_mode<synchronous>, transform_indices = @transform_1, window_bounds = array<i64: 128, 64>}, {pipeline_mode = #tpu.pipeline_mode<synchronous>, transform_indices = @transform_2, window_bounds = array<i64: 1, 64>}, {pipeline_mode = #tpu.pipeline_mode<synchronous>, transform_indices = @transform_3, window_bounds = array<i64: 64, 32>}, {pipeline_mode = #tpu.pipeline_mode<synchronous>, transform_indices = @transform_4, window_bounds = array<i64: 1, 32>}, {pipeline_mode = #tpu.pipeline_mode<synchronous>, transform_indices = @transform_5, window_bounds = array<i64: 32, 128>}, {pipeline_mode = #tpu.pipeline_mode<synchronous>, transform_indices = @transform_6, window_bounds = array<i64: 128, 128>}, {pipeline_mode = #tpu.pipeline_mode<synchronous>, transform_indices = @transform_7, window_bounds = array<i64: 1, 128>}, {transform_indices = @transform_8, window_bounds = array<i64: 8, 128>}]} {
    %c0 = arith.constant 0 : index
    %c0_0 = arith.constant 0 : index
    %0 = vector.load %arg1[%c0, %c0_0] : memref<8x128xbf16, #tpu.memory_space<vmem>>, vector<8x128xbf16>
    %c0_1 = arith.constant 0 : index
    %c0_2 = arith.constant 0 : index
    %1 = vector.load %arg2[%c0_1, %c0_2] : memref<128x64xbf16, #tpu.memory_space<vmem>>, vector<128x64xbf16>
    %cst = arith.constant dense<0.000000e+00> : vector<8x64xf32>
    %2 = tpu.matmul %0, %1, %cst {dimension_numbers = #tpu.dot_dimension_numbers<[1], [0], [0], [1], [0, 0, 1, 1], [], []>} : vector<8x128xbf16>, vector<128x64xbf16>, vector<8x64xf32> -> vector<8x64xf32>
    %c0_3 = arith.constant 0 : index
    %c0_4 = arith.constant 0 : index
    %3 = vector.load %arg3[%c0_3, %c0_4] : memref<1x64xf32, #tpu.memory_space<vmem>>, vector<1x64xf32>
    %4 = vector.broadcast %3 : vector<1x64xf32> to vector<8x64xf32>
    %5 = arith.addf %2, %4 : vector<8x64xf32>
    %cst_5 = arith.constant 0.000000e+00 : f32
    %6 = vector.broadcast %cst_5 : f32 to vector<8x64xf32>
    %7 = arith.maximumf %5, %6 : vector<8x64xf32>
    %8 = arith.truncf %7 : vector<8x64xf32> to vector<8x64xbf16>
    %c0_6 = arith.constant 0 : index
    %c0_7 = arith.constant 0 : index
    %9 = vector.load %arg4[%c0_6, %c0_7] : memref<64x32xbf16, #tpu.memory_space<vmem>>, vector<64x32xbf16>
    %cst_8 = arith.constant dense<0.000000e+00> : vector<8x32xf32>
    %10 = tpu.matmul %8, %9, %cst_8 {dimension_numbers = #tpu.dot_dimension_numbers<[1], [0], [0], [1], [0, 0, 1, 1], [], []>} : vector<8x64xbf16>, vector<64x32xbf16>, vector<8x32xf32> -> vector<8x32xf32>
    %c0_9 = arith.constant 0 : index
    %c0_10 = arith.constant 0 : index
    %11 = vector.load %arg5[%c0_9, %c0_10] : memref<1x32xf32, #tpu.memory_space<vmem>>, vector<1x32xf32>
    %12 = vector.broadcast %11 : vector<1x32xf32> to vector<8x32xf32>
    %13 = arith.addf %10, %12 : vector<8x32xf32>
    %cst_11 = arith.constant 0.000000e+00 : f32
    %14 = vector.broadcast %cst_11 : f32 to vector<8x32xf32>
    %15 = arith.maximumf %13, %14 : vector<8x32xf32>
    %16 = arith.truncf %15 : vector<8x32xf32> to vector<8x32xbf16>
    %c0_12 = arith.constant 0 : index
    %c0_13 = arith.constant 0 : index
    %17 = vector.load %arg6[%c0_12, %c0_13] : memref<32x128xbf16, #tpu.memory_space<vmem>>, vector<32x128xbf16>
    %cst_14 = arith.constant dense<0.000000e+00> : vector<8x128xf32>
    %18 = tpu.matmul %16, %17, %cst_14 {dimension_numbers = #tpu.dot_dimension_numbers<[1], [0], [0], [1], [0, 0, 1, 1], [], []>} : vector<8x32xbf16>, vector<32x128xbf16>, vector<8x128xf32> -> vector<8x128xf32>
    %c0_15 = arith.constant 0 : index
    %c0_16 = arith.constant 0 : index
    %19 = vector.load %arg7[%c0_15, %c0_16] : memref<128x128xbf16, #tpu.memory_space<vmem>>, vector<128x128xbf16>
    %cst_17 = arith.constant dense<0.000000e+00> : vector<8x128xf32>
    %20 = tpu.matmul %0, %19, %cst_17 {dimension_numbers = #tpu.dot_dimension_numbers<[1], [0], [0], [1], [0, 0, 1, 1], [], []>} : vector<8x128xbf16>, vector<128x128xbf16>, vector<8x128xf32> -> vector<8x128xf32>
    %21 = arith.addf %18, %20 : vector<8x128xf32>
    %c0_18 = arith.constant 0 : index
    %c0_19 = arith.constant 0 : index
    %22 = vector.load %arg8[%c0_18, %c0_19] : memref<1x128xf32, #tpu.memory_space<vmem>>, vector<1x128xf32>
    %23 = vector.broadcast %22 : vector<1x128xf32> to vector<8x128xf32>
    %24 = arith.addf %21, %23 : vector<8x128xf32>
    %c0_20 = arith.constant 0 : index
    %c0_21 = arith.constant 0 : index
    %25 = vector.load %arg9[%c0_20, %c0_21] : memref<8x128xf32, #tpu.memory_space<vmem>>, vector<8x128xf32>
    tpu.vector_store %arg9[%c0_20, %c0_21], %24 {strides = array<i32>} : memref<8x128xf32, #tpu.memory_space<vmem>>, vector<8x128xf32>,
    return
  }
  func.func @transform_0(%arg0: i32) -> (i32, i32) {
    %c0_i32 = arith.constant 0 : i32
    %c0_i32_0 = arith.constant 0 : i32
    return %arg0, %c0_i32 : i32, i32
  }
  func.func @transform_1(%arg0: i32) -> (i32, i32) {
    %c0_i32 = arith.constant 0 : i32
    %c0_i32_0 = arith.constant 0 : i32
    %c0_i32_1 = arith.constant 0 : i32
    return %c0_i32, %c0_i32_0 : i32, i32
  }
  func.func @transform_2(%arg0: i32) -> (i32, i32) {
    %c0_i32 = arith.constant 0 : i32
    %c0_i32_0 = arith.constant 0 : i32
    %c0_i32_1 = arith.constant 0 : i32
    return %c0_i32, %c0_i32_0 : i32, i32
  }
  func.func @transform_3(%arg0: i32) -> (i32, i32) {
    %c0_i32 = arith.constant 0 : i32
    %c0_i32_0 = arith.constant 0 : i32
    %c0_i32_1 = arith.constant 0 : i32
    return %c0_i32, %c0_i32_0 : i32, i32
  }
  func.func @transform_4(%arg0: i32) -> (i32, i32) {
    %c0_i32 = arith.constant 0 : i32
    %c0_i32_0 = arith.constant 0 : i32
    %c0_i32_1 = arith.constant 0 : i32
    return %c0_i32, %c0_i32_0 : i32, i32
  }
  func.func @transform_5(%arg0: i32) -> (i32, i32) {
    %c0_i32 = arith.constant 0 : i32
    %c0_i32_0 = arith.constant 0 : i32
    %c0_i32_1 = arith.constant 0 : i32
    return %c0_i32, %c0_i32_0 : i32, i32
  }
  func.func @transform_6(%arg0: i32) -> (i32, i32) {
    %c0_i32 = arith.constant 0 : i32
    %c0_i32_0 = arith.constant 0 : i32
    %c0_i32_1 = arith.constant 0 : i32
    return %c0_i32, %c0_i32_0 : i32, i32
  }
  func.func @transform_7(%arg0: i32) -> (i32, i32) {
    %c0_i32 = arith.constant 0 : i32
    %c0_i32_0 = arith.constant 0 : i32
    %c0_i32_1 = arith.constant 0 : i32
    return %c0_i32, %c0_i32_0 : i32, i32
  }
  func.func @transform_8(%arg0: i32) -> (i32, i32) {
    %c0_i32 = arith.constant 0 : i32
    %c0_i32_0 = arith.constant 0 : i32
    return %arg0, %c0_i32 : i32, i32
  }
}

</mosaic_0001>

<llo_original>
// kernel: tpu_custom_call.1
$region0: #{tpu_custom_call.1}
  #allocation0 [shape = 'u32[]', space=smem, size = 0x4, offset = 0x4, fixed_abs, tag = 'smem constant byte address 0x4 - core index']
  #allocation1 [shape = 'u32[144,128]{1,0:T(1,128)}', space=vmem, size = 0x12000, scoped, tag = 'internal scratch']
  %s0 = inlined_call_operand.vmem [shape: bf16[8,128], index: 0, kind: input, shape index: {}]
  %s1 = inlined_call_operand.vmem [shape: bf16[128,64], index: 1, kind: input, shape index: {}]
  %s2 = inlined_call_operand.vmem [shape: f32[1,64], index: 2, kind: input, shape index: {}]
  %s3 = inlined_call_operand.vmem [shape: bf16[64,32], index: 3, kind: input, shape index: {}]
  %s4 = inlined_call_operand.vmem [shape: f32[1,32], index: 4, kind: input, shape index: {}]
  %s5 = inlined_call_operand.vmem [shape: bf16[32,128], index: 5, kind: input, shape index: {}]
  %s6 = inlined_call_operand.vmem [shape: bf16[128,128], index: 6, kind: input, shape index: {}]
  %s7 = inlined_call_operand.vmem [shape: f32[1,128], index: 7, kind: input, shape index: {}]
  %s8 = inlined_call_operand.hbm [shape: f32[8,128], index: 8, kind: output, shape index: {}]
  %s9 = sld [smem:[#allocation0]]
  $region42: #{tpu_custom_call.1} parent=0
    _
  %s11 = ssub.s32 1, %s9
  %s12 = scalar_select 0, %s11, %s9
  $region1: #{tpu_custom_call.1} parent=0
    #allocation2 [shape = 'u8[4096]{0}', space=vmem, size = 0x1000, scoped, tag = 'output window, operand 0, single buffered']
    #allocation3 [shape = 's32[1]{0}', space=sflag, size = 0x4, scoped, tag = 'scoped memory for tpu_custom_call.1']
    %13 = vsyncpa [#allocation3], 0
    // Predicated region
    $region2: #{tpu_custom_call.1} parent=1 // pred_check
      _
    $region3: #{tpu_custom_call.1} parent=1 // pred_check_branch
      %15 = sbr.rel (0) target = $region5
    $region4: #{tpu_custom_call.1} parent=1 // pred_region
      _
    $region5: #{tpu_custom_call.1} parent=1 // pred_fallthru
      _
    // Predicated region
    $region6: #{tpu_custom_call.1} parent=1 // pred_check
      _
    $region7: #{tpu_custom_call.1} parent=1 // pred_check_branch
      %17 = sbr.rel (0) target = $region9
    $region8: #{tpu_custom_call.1} parent=1 // pred_region
      _
    $region9: #{tpu_custom_call.1} parent=1 // pred_fallthru
      _
    // Predicated region
    $region10: #{tpu_custom_call.1} parent=1 // pred_check
      _
    $region11: #{tpu_custom_call.1} parent=1 // pred_check_branch
      %19 = sbr.rel (0) target = $region13
    $region12: #{tpu_custom_call.1} parent=1 // pred_region
      _
    $region13: #{tpu_custom_call.1} parent=1 // pred_fallthru
      _
    // Predicated region
    $region14: #{tpu_custom_call.1} parent=1 // pred_check
      _
    $region15: #{tpu_custom_call.1} parent=1 // pred_check_branch
      %21 = sbr.rel (0) target = $region17
    $region16: #{tpu_custom_call.1} parent=1 // pred_region
      _
    $region17: #{tpu_custom_call.1} parent=1 // pred_fallthru
      _
    // Predicated region
    $region18: #{tpu_custom_call.1} parent=1 // pred_check
      _
    $region19: #{tpu_custom_call.1} parent=1 // pred_check_branch
      %23 = sbr.rel (0) target = $region21
    $region20: #{tpu_custom_call.1} parent=1 // pred_region
      _
    $region21: #{tpu_custom_call.1} parent=1 // pred_fallthru
      _
    // Predicated region
    $region22: #{tpu_custom_call.1} parent=1 // pred_check
      _
    $region23: #{tpu_custom_call.1} parent=1 // pred_check_branch
      %25 = sbr.rel (0) target = $region25
    $region24: #{tpu_custom_call.1} parent=1 // pred_region
      _
    $region25: #{tpu_custom_call.1} parent=1 // pred_fallthru
      _
    // Predicated region
    $region26: #{tpu_custom_call.1} parent=1 // pred_check
      _
    $region27: #{tpu_custom_call.1} parent=1 // pred_check_branch
      %27 = sbr.rel (0) target = $region29
    $region28: #{tpu_custom_call.1} parent=1 // pred_region
      _
    $region29: #{tpu_custom_call.1} parent=1 // pred_fallthru
      _
    // Predicated region
    $region30: #{tpu_custom_call.1} parent=1 // pred_check
      _
    $region31: #{tpu_custom_call.1} parent=1 // pred_check_branch
      %29 = sbr.rel (0) target = $region33
    $region32: #{tpu_custom_call.1} parent=1 // pred_region
      _
    $region33: #{tpu_custom_call.1} parent=1 // pred_fallthru
      _
    %v31 = vld [vmem:[%s0] sm:$0xf]
    %v32 = vld [vmem:[%s1] sm:$0xf]
    %v33 = vld [vmem:[%s1 + $0x4] sm:$0xf]
    %v34 = vld [vmem:[%s1 + $0x8] sm:$0xf]
    %v35 = vld [vmem:[%s1 + $0xc] sm:$0xf]
    %v36 = vld [vmem:[%s1 + $0x10] sm:$0xf]
    %v37 = vld [vmem:[%s1 + $0x14] sm:$0xf]
    %v38 = vld [vmem:[%s1 + $0x18] sm:$0xf]
    %v39 = vld [vmem:[%s1 + $0x1c] sm:$0xf]
    %v40 = vld [vmem:[%s1 + $0x20] sm:$0xf]
    %v41 = vld [vmem:[%s1 + $0x24] sm:$0xf]
    %v42 = vld [vmem:[%s1 + $0x28] sm:$0xf]
    %v43 = vld [vmem:[%s1 + $0x2c] sm:$0xf]
    %v44 = vld [vmem:[%s1 + $0x30] sm:$0xf]
    %v45 = vld [vmem:[%s1 + $0x34] sm:$0xf]
    %v46 = vld [vmem:[%s1 + $0x38] sm:$0xf]
    %v47 = vld [vmem:[%s1 + $0x3c] sm:$0xf]
    %v48 = vld [vmem:[%s2] sm:$0x1]
    %v50 = vlaneseq
    %v51 = vshrl.u32 %v50, 7
    %v52 = vsub.s32 0, %v51
    %v53 = vrot.slane %v48, %v52
    %v71 = vunpack.c.l.b16 %v32
    %v72 = vunpack.c.l.b16 %v33
    %v73 = vunpack.c.l.b16 %v34
    %v74 = vunpack.c.l.b16 %v35
    %v75 = vunpack.c.l.b16 %v36
    %v76 = vunpack.c.l.b16 %v37
    %v77 = vunpack.c.l.b16 %v38
    %v78 = vunpack.c.l.b16 %v39
    %v79 = vunpack.c.l.b16 %v40
    %v80 = vunpack.c.l.b16 %v41
    %v81 = vunpack.c.l.b16 %v42
    %v82 = vunpack.c.l.b16 %v43
    %v83 = vunpack.c.l.b16 %v44
    %v84 = vunpack.c.l.b16 %v45
    %v85 = vunpack.c.l.b16 %v46
    %v86 = vunpack.c.l.b16 %v47
    %v87 = vpack.c.b16 %v72, %v71
    %v88 = vpack.c.b16 %v74, %v73
    %v89 = vpack.c.b16 %v76, %v75
    %v90 = vpack.c.b16 %v78, %v77
    %v91 = vpack.c.b16 %v80, %v79
    %v92 = vpack.c.b16 %v82, %v81
    %v93 = vpack.c.b16 %v84, %v83
    %v94 = vpack.c.b16 %v86, %v85
    %103 = vmatprep.subr.bf16.mxu0 0
    %104 = vmatpush1.bf16.msra.mxu0 %v87
    %105 = vmatprep.subr.bf16.mxu0 0
    %106 = vmatpush1.bf16.msra.mxu0 %v88
    %107 = vmatprep.subr.bf16.mxu0 0
    %108 = vmatpush1.bf16.msra.mxu0 %v89
    %109 = vmatprep.subr.bf16.mxu0 0
    %110 = vmatpush1.bf16.msra.mxu0 %v90
    %111 = vmatprep.subr.bf16.mxu0 0
    %112 = vmatpush1.bf16.msra.mxu0 %v91
    %113 = vmatprep.subr.bf16.mxu0 0
    %114 = vmatpush1.bf16.msra.mxu0 %v92
    %115 = vmatprep.subr.bf16.mxu0 0
    %116 = vmatpush1.bf16.msra.mxu0 %v93
    %117 = vmatprep.subr.bf16.mxu0 0
    %118 = vmatpush1.bf16.msra.mxu0 %v94
    %119 = vmatprep.subr.bf16.mxu0 0
    %120 = vmatpush1.bf16.msra.mxu0 0
    %121 = vmatprep.subr.bf16.mxu0 0
    %122 = vmatpush1.bf16.msra.mxu0 0
    %123 = vmatprep.subr.bf16.mxu0 0
    %124 = vmatpush1.bf16.msra.mxu0 0
    %125 = vmatprep.subr.bf16.mxu0 0
    %126 = vmatpush1.bf16.msra.mxu0 0
    %127 = vmatprep.subr.bf16.mxu0 0
    %128 = vmatpush1.bf16.msra.mxu0 0
    %129 = vmatprep.subr.bf16.mxu0 0
    %130 = vmatpush1.bf16.msra.mxu0 0
    %131 = vmatprep.subr.bf16.mxu0 0
    %132 = vmatpush1.bf16.msra.mxu0 0
    %133 = vmatprep.subr.bf16.mxu0 0
    %134 = vmatpush1.bf16.msra.mxu0 0
    %135 = vmatprep.mubr.bf16.mxu0 0
    %136 = vmatmul.mubr.bf16.gmra.mrb[0].mxu0 %v31
    %v137 = vpop.f32.mrb[0].mxu0
    %v138 = vadd.f32 %v53, %v137
    %v139 = vpop.f32.mrb[0].mxu0
    %v140 = vpop.f32.mrb[0].mxu0
    %v141 = vpop.f32.mrb[0].mxu0
    %142 = vdwg.mxu0
    %v143 = vmax.f32 %v138, 0.0
    %v144 = vpack.c.bf16 %v143, %v143
    %v145 = vld [vmem:[%s3] sm:$0xf]
    %v146 = vld [vmem:[%s3 + $0x4] sm:$0xf]
    %v147 = vld [vmem:[%s3 + $0x8] sm:$0xf]
    %v148 = vld [vmem:[%s3 + $0xc] sm:$0xf]
    %v149 = vld [vmem:[%s3 + $0x10] sm:$0xf]
    %v150 = vld [vmem:[%s3 + $0x14] sm:$0xf]
    %v151 = vld [vmem:[%s3 + $0x18] sm:$0xf]
    %v152 = vld [vmem:[%s3 + $0x1c] sm:$0xf]
    %v153 = vld [vmem:[%s4] sm:$0x1]
    %v155 = vlaneseq
    %v156 = vshrl.u32 %v155, 7
    %v157 = vsub.s32 0, %v156
    %v158 = vrot.slane %v153, %v157
    %v168 = vunpack.c.l.b16 %v145
    %v169 = vunpack.c.l.b16 %v146
    %v170 = vunpack.c.l.b16 %v147
    %v171 = vunpack.c.l.b16 %v148
    %v172 = vunpack.c.l.b16 %v149
    %v173 = vunpack.c.l.b16 %v150
    %v174 = vunpack.c.l.b16 %v151
    %v175 = vunpack.c.l.b16 %v152
    %v176 = vpack.c.b16 %v169, %v168
    %v177 = vpack.c.b16 %v171, %v170
    %v178 = vpack.c.b16 %v173, %v172
    %v179 = vpack.c.b16 %v175, %v174
    %vm184 = vcmask 523264
    %v186 = vsel %vm184, %v144, 0
    %188 = vmatprep.subr.bf16.mxu0 0
    %189 = vmatpush1.bf16.msra.mxu0 %v176
    %190 = vmatprep.subr.bf16.mxu0 0
    %191 = vmatpush1.bf16.msra.mxu0 %v177
    %192 = vmatprep.subr.bf16.mxu0 0
    %193 = vmatpush1.bf16.msra.mxu0 %v178
    %194 = vmatprep.subr.bf16.mxu0 0
    %195 = vmatpush1.bf16.msra.mxu0 %v179
    %196 = vmatprep.subr.bf16.mxu0 0
    %197 = vmatpush1.bf16.msra.mxu0 0
    %198 = vmatprep.subr.bf16.mxu0 0
    %199 = vmatpush1.bf16.msra.mxu0 0
    %200 = vmatprep.subr.bf16.mxu0 0
    %201 = vmatpush1.bf16.msra.mxu0 0
    %202 = vmatprep.subr.bf16.mxu0 0
    %203 = vmatpush1.bf16.msra.mxu0 0
    %204 = vmatprep.subr.bf16.mxu0 0
    %205 = vmatpush1.bf16.msra.mxu0 0
    %206 = vmatprep.subr.bf16.mxu0 0
    %207 = vmatpush1.bf16.msra.mxu0 0
    %208 = vmatprep.subr.bf16.mxu0 0
    %209 = vmatpush1.bf16.msra.mxu0 0
    %210 = vmatprep.subr.bf16.mxu0 0
    %211 = vmatpush1.bf16.msra.mxu0 0
    %212 = vmatprep.subr.bf16.mxu0 0
    %213 = vmatpush1.bf16.msra.mxu0 0
    %214 = vmatprep.subr.bf16.mxu0 0
    %215 = vmatpush1.bf16.msra.mxu0 0
    %216 = vmatprep.subr.bf16.mxu0 0
    %217 = vmatpush1.bf16.msra.mxu0 0
    %218 = vmatprep.subr.bf16.mxu0 0
    %219 = vmatpush1.bf16.msra.mxu0 0
    %220 = vmatprep.mubr.bf16.mxu0 0
    %221 = vmatmul.mubr.bf16.gmra.mrb[0].mxu0 %v186
    %v222 = vpop.f32.mrb[0].mxu0
    %v223 = vadd.f32 %v158, %v222
    %v224 = vpop.f32.mrb[0].mxu0
    %v225 = vpop.f32.mrb[0].mxu0
    %v226 = vpop.f32.mrb[0].mxu0
    %227 = vdwg.mxu0
    %v228 = vmax.f32 %v223, 0.0
    %v229 = vpack.c.bf16 %v228, %v228
    %v230 = vld [vmem:[%s5] sm:$0xf]
    %v231 = vld [vmem:[%s5 + $0x4] sm:$0xf]
    %v232 = vld [vmem:[%s5 + $0x8] sm:$0xf]
    %v233 = vld [vmem:[%s5 + $0xc] sm:$0xf]
    %v234 = vld [vmem:[%s6] sm:$0xf]
    %v235 = vld [vmem:[%s6 + $0x4] sm:$0xf]
    %v236 = vld [vmem:[%s6 + $0x8] sm:$0xf]
    %v237 = vld [vmem:[%s6 + $0xc] sm:$0xf]
    %v238 = vld [vmem:[%s6 + $0x10] sm:$0xf]
    %v239 = vld [vmem:[%s6 + $0x14] sm:$0xf]
    %v240 = vld [vmem:[%s6 + $0x18] sm:$0xf]
    %v241 = vld [vmem:[%s6 + $0x1c] sm:$0xf]
    %v242 = vld [vmem:[%s6 + $0x20] sm:$0xf]
    %v243 = vld [vmem:[%s6 + $0x24] sm:$0xf]
    %v244 = vld [vmem:[%s6 + $0x28] sm:$0xf]
    %v245 = vld [vmem:[%s6 + $0x2c] sm:$0xf]
    %v246 = vld [vmem:[%s6 + $0x30] sm:$0xf]
    %v247 = vld [vmem:[%s6 + $0x34] sm:$0xf]
    %v248 = vld [vmem:[%s6 + $0x38] sm:$0xf]
    %v249 = vld [vmem:[%s6 + $0x3c] sm:$0xf]
    %v266 = vunpack.c.l.b16 %v234
    %v267 = vunpack.c.l.b16 %v235
    %v268 = vunpack.c.l.b16 %v236
    %v269 = vunpack.c.l.b16 %v237
    %v270 = vunpack.c.l.b16 %v238
    %v271 = vunpack.c.l.b16 %v239
    %v272 = vunpack.c.l.b16 %v240
    %v273 = vunpack.c.l.b16 %v241
    %v274 = vunpack.c.l.b16 %v242
    %v275 = vunpack.c.l.b16 %v243
    %v276 = vunpack.c.l.b16 %v244
    %v277 = vunpack.c.l.b16 %v245
    %v278 = vunpack.c.l.b16 %v246
    %v279 = vunpack.c.l.b16 %v247
    %v280 = vunpack.c.l.b16 %v248
    %v281 = vunpack.c.l.b16 %v249
    %v282 = vpack.c.b16 %v267, %v266
    %v283 = vpack.c.b16 %v269, %v268
    %v284 = vpack.c.b16 %v271, %v270
    %v285 = vpack.c.b16 %v273, %v272
    %v286 = vpack.c.b16 %v275, %v274
    %v287 = vpack.c.b16 %v277, %v276
    %v288 = vpack.c.b16 %v279, %v278
    %v289 = vpack.c.b16 %v281, %v280
    %298 = vmatprep.subr.bf16.mxu0 0
    %299 = vmatpush1.bf16.msra.mxu0 %v282
    %300 = vmatprep.subr.bf16.mxu0 0
    %301 = vmatpush1.bf16.msra.mxu0 %v283
    %302 = vmatprep.subr.bf16.mxu0 0
    %303 = vmatpush1.bf16.msra.mxu0 %v284
    %304 = vmatprep.subr.bf16.mxu0 0
    %305 = vmatpush1.bf16.msra.mxu0 %v285
    %306 = vmatprep.subr.bf16.mxu0 0
    %307 = vmatpush1.bf16.msra.mxu0 %v286
    %308 = vmatprep.subr.bf16.mxu0 0
    %309 = vmatpush1.bf16.msra.mxu0 %v287
    %310 = vmatprep.subr.bf16.mxu0 0
    %311 = vmatpush1.bf16.msra.mxu0 %v288
    %312 = vmatprep.subr.bf16.mxu0 0
    %313 = vmatpush1.bf16.msra.mxu0 %v289
    %314 = vmatprep.subr.bf16.mxu0 0
    %315 = vmatpush1.bf16.msra.mxu0 0
    %316 = vmatprep.subr.bf16.mxu0 0
    %317 = vmatpush1.bf16.msra.mxu0 0
    %318 = vmatprep.subr.bf16.mxu0 0
    %319 = vmatpush1.bf16.msra.mxu0 0
    %320 = vmatprep.subr.bf16.mxu0 0
    %321 = vmatpush1.bf16.msra.mxu0 0
    %322 = vmatprep.subr.bf16.mxu0 0
    %323 = vmatpush1.bf16.msra.mxu0 0
    %324 = vmatprep.subr.bf16.mxu0 0
    %325 = vmatpush1.bf16.msra.mxu0 0
    %326 = vmatprep.subr.bf16.mxu0 0
    %327 = vmatpush1.bf16.msra.mxu0 0
    %328 = vmatprep.subr.bf16.mxu0 0
    %329 = vmatpush1.bf16.msra.mxu0 0
    %330 = vmatprep.mubr.bf16.mxu0 0
    %331 = vmatmul.mubr.bf16.gmra.mrb[0].mxu0 %v31
    %v332 = vpop.f32.mrb[0].mxu0
    %v333 = vadd.f32 0.0, %v332
    %v334 = vpop.f32.mrb[0].mxu0
    %v335 = vpop.f32.mrb[0].mxu0
    %v336 = vpop.f32.mrb[0].mxu0
    %337 = vdwg.mxu0
    %v342 = vunpack.c.l.b16 %v230
    %v343 = vunpack.c.l.b16 %v231
    %v344 = vunpack.c.l.b16 %v232
    %v345 = vunpack.c.l.b16 %v233
    %v346 = vpack.c.b16 %v343, %v342
    %v347 = vpack.c.b16 %v345, %v344
    %vm350 = vcmask 261120
    %v352 = vsel %vm350, %v229, 0
    %354 = vmatprep.subr.bf16.mxu0 0
    %355 = vmatpush1.bf16.msra.mxu0 %v346
    %356 = vmatprep.subr.bf16.mxu0 0
    %357 = vmatpush1.bf16.msra.mxu0 %v347
    %358 = vmatprep.subr.bf16.mxu0 0
    %359 = vmatpush1.bf16.msra.mxu0 0
    %360 = vmatprep.subr.bf16.mxu0 0
    %361 = vmatpush1.bf16.msra.mxu0 0
    %362 = vmatprep.subr.bf16.mxu0 0
    %363 = vmatpush1.bf16.msra.mxu0 0
    %364 = vmatprep.subr.bf16.mxu0 0
    %365 = vmatpush1.bf16.msra.mxu0 0
    %366 = vmatprep.subr.bf16.mxu0 0
    %367 = vmatpush1.bf16.msra.mxu0 0
    %368 = vmatprep.subr.bf16.mxu0 0
    %369 = vmatpush1.bf16.msra.mxu0 0
    %370 = vmatprep.subr.bf16.mxu0 0
    %371 = vmatpush1.bf16.msra.mxu0 0
    %372 = vmatprep.subr.bf16.mxu0 0
    %373 = vmatpush1.bf16.msra.mxu0 0
    %374 = vmatprep.subr.bf16.mxu0 0
    %375 = vmatpush1.bf16.msra.mxu0 0
    %376 = vmatprep.subr.bf16.mxu0 0
    %377 = vmatpush1.bf16.msra.mxu0 0
    %378 = vmatprep.subr.bf16.mxu0 0
    %379 = vmatpush1.bf16.msra.mxu0 0
    %380 = vmatprep.subr.bf16.mxu0 0
    %381 = vmatpush1.bf16.msra.mxu0 0
    %382 = vmatprep.subr.bf16.mxu0 0
    %383 = vmatpush1.bf16.msra.mxu0 0
    %384 = vmatprep.subr.bf16.mxu0 0
    %385 = vmatpush1.bf16.msra.mxu0 0
    %386 = vmatprep.mubr.bf16.mxu0 0
    %387 = vmatmul.mubr.bf16.gmra.mrb[0].mxu0 %v352
    %v388 = vpop.f32.mrb[0].mxu0
    %v389 = vadd.f32 %v333, %v388
    %v390 = vpop.f32.mrb[0].mxu0
    %v391 = vpop.f32.mrb[0].mxu0
    %v392 = vpop.f32.mrb[0].mxu0
    %393 = vdwg.mxu0
    %v394 = vld [vmem:[%s7] sm:$0x1]
    %v396 = vlaneseq
    %v397 = vshrl.u32 %v396, 7
    %v398 = vsub.s32 0, %v397
    %v399 = vrot.slane %v394, %v398
    %v401 = vadd.f32 %v389, %v399
    %402 = vst [vmem:[#allocation2] sm:$0xff] %v401
    // Predicated region
    $region34: #{tpu_custom_call.1} parent=1 // pred_check
      _
    $region35: #{tpu_custom_call.1} parent=1 // pred_check_branch
      %404 = sbr.rel (0) target = $region37
    $region36: #{tpu_custom_call.1} parent=1 // pred_region
      %s406 = ssub.s32 128, 128
      %407 = vsyncadd [#allocation3], %s406
      %s409 = sshll.u32 [#allocation2], 4
      %s410 = int_to_ptr.vmem [resolvable:$true] %s409
      %412 = dma.vmem_to_hbm [thread:$0]  %s410, 128, %s8, [#allocation3]
    $region37: #{tpu_custom_call.1} parent=1 // pred_fallthru
      _
    // Predicated region
    $region38: #{tpu_custom_call.1} parent=1 // pred_check
      _
    $region39: #{tpu_custom_call.1} parent=1 // pred_check_branch
      %414 = sbr.rel (0) target = $region41
    $region40: #{tpu_custom_call.1} parent=1 // pred_region
      %415 = dma.done [#allocation3], 128
    $region41: #{tpu_custom_call.1} parent=1 // pred_fallthru
      _
    %416 = vsyncpa [#allocation3], 1

</llo_original>
